<compile_context>
chip_gen: v7x
topology: tpu7x:2x2x1
jax: 0.10.0
libtpu: 0.0.40
codegen_flags: <defaults>
</compile_context>

<pallas_src>
import math

import jax
import jax.numpy as jnp
from jax.experimental import pallas as pl
from jax.experimental.pallas import tpu as pltpu


_MM_PRECISION = jax.lax.Precision.HIGHEST   # accurate f32 MXU passes


def _round_up(n: int, m: int) -> int:
    return ((n + m - 1) // m) * m


def _cdiv(a: int, b: int) -> int:
    return (a + b - 1) // b


def _vmem_budget():
    """(pipeline VMEM budget bytes, vmem_limit_bytes) for this chip."""
    cap = None
    try:
        cap = getattr(pltpu.get_tpu_info(), "vmem_capacity_bytes", None)
    except Exception:
        cap = None
    if cap is None:
        cap = 64 << 20                    # conservative: assume v7x-sized VMEM
    if cap <= (64 << 20):                 # v7x: 64 MiB per TensorCore
        return 40 << 20, 56 << 20
    return 80 << 20, 96 << 20             # v5e / v6e: 128 MiB physical


def _make_packed_kernel(batch: int, block_rows: int):
    """Lane-dense path: x block is (TB, S*F); reductions run on the MXU."""
    needs_mask = (batch % block_rows) != 0

    def kernel(x_ref, wbig_ref, expand_ref, pool_ref, b_ref, o_ref):
        # x: (TB, S*F)  wbig: (S*F, S)  expand: (S, S*F)  pool: (S*F, F)
        # b: (1, S)     o: (TB, F)
        x = x_ref[...].astype(jnp.float32)
        # eij[b, s] = sum_f x[b, s*F + f] * weight[f]   (MXU, VPU stays free)
        eij = jnp.dot(x, wbig_ref[...], preferred_element_type=jnp.float32,
                      precision=_MM_PRECISION)                        # (TB, S)
        eij = jnp.tanh(eij + b_ref[...])
        if needs_mask:
            # ragged last block: zero the garbage tail rows before exp
            row = (pl.program_id(0) * block_rows
                   + jax.lax.broadcasted_iota(jnp.int32, (block_rows, 1), 0))
            eij = jnp.where(row < batch, eij, 0.0)
        a = jnp.exp(eij)                                              # (TB, S)
        a = a / jnp.sum(a, axis=-1, keepdims=True) + 1e-10
        # broadcast a across each step's F lanes with a 0/1 expansion matmul
        a_lanes = jnp.dot(a, expand_ref[...],
                          preferred_element_type=jnp.float32,
                          precision=_MM_PRECISION)                    # (TB, S*F)
        weighted = x * a_lanes            # single full-lane-density VPU multiply
        out = jnp.dot(weighted, pool_ref[...],
                      preferred_element_type=jnp.float32,
                      precision=_MM_PRECISION)                        # (TB, F)
        o_ref[...] = out.astype(o_ref.dtype)

    return kernel


def _make_wide_kernel(batch: int, block_rows: int):
    """F % 128 == 0 path: already lane-dense, keep the fused VPU reductions."""
    needs_mask = (batch % block_rows) != 0

    def kernel(x_ref, w_ref, b_ref, o_ref):
        # x: (TB, S, F)  w: (1, 1, F)  b: (1, S)  o: (TB, F)
        x = x_ref[...].astype(jnp.float32)
        eij = jnp.sum(x * w_ref[...], axis=-1)                        # (TB, S)
        eij = jnp.tanh(eij + b_ref[...])
        if needs_mask:
            row = (pl.program_id(0) * block_rows
                   + jax.lax.broadcasted_iota(jnp.int32, (block_rows, 1), 0))
            eij = jnp.where(row < batch, eij, 0.0)
        a = jnp.exp(eij)
        a = a / jnp.sum(a, axis=-1, keepdims=True) + 1e-10
        o_ref[...] = jnp.sum(x * a[:, :, None], axis=1).astype(o_ref.dtype)

    return kernel


def attention_pool(x, weight, bias, *, block_rows=None):
    """x: (B, S, F), weight: (F, 1), bias: (S,)  ->  (B, F)."""
    B, S, F = x.shape
    in_itemsize = jnp.dtype(x.dtype).itemsize
    out_dtype = x.dtype
    lane, sub = 128, 8

    # Lane-dense MXU-assisted path when F is not a vreg-width multiple (the
    # constant matrices stay tiny for pooling-sized S/F).  Tiny batches fall
    # back to the plain VPU path (matmul M would be degenerate there anyway).
    packed = (F % lane != 0) and (B >= 8) and (S * F * max(S, F) * 4 <= (8 << 20))

    pipeline_budget, vmem_limit = _vmem_budget()

    if packed:
        x_row_pad = _round_up(S * F, lane) * in_itemsize
        x_row_f32 = _round_up(S * F, lane) * 4
        const_bytes = 2 * 4 * (
            _round_up(S * F, sub) * _round_up(S, lane)       # weight block-diag
            + _round_up(S, sub) * _round_up(S * F, lane)     # expand
            + _round_up(S * F, sub) * _round_up(F, lane)     # pool
            + _round_up(S, lane))                            # bias row
        n_tmp = 3      # f32 upcast of x, a_lanes, weighted
    else:
        x_row_pad = _round_up(S, sub) * _round_up(F, lane) * in_itemsize
        x_row_f32 = _round_up(S, sub) * _round_up(F, lane) * 4
        const_bytes = 2 * 4 * (_round_up(F, lane) + _round_up(S, lane))
        n_tmp = 2      # f32 upcast of x, weighted product
    out_row_pad = _round_up(F, lane) * jnp.dtype(out_dtype).itemsize
    per_row = 2 * x_row_pad + 2 * out_row_pad + n_tmp * x_row_f32

    if block_rows is None:
        margin = 2 << 20
        tb = (pipeline_budget - const_bytes - margin) // per_row
        tb = max(8, (tb // 8) * 8)
        # keep >= ~4 batch blocks so the "parallel" axis feeds both v7x
        # TensorCores and double-buffering always has work to overlap
        tb = min(tb, max(8, _round_up(_cdiv(B, 4), 8)))
    else:
        tb = max(8, _round_up(int(block_rows), 8))
    if tb >= B:
        tb = B                      # single full block (block dim == array dim)

    grid = (_cdiv(B, tb),)
    bias_row = bias.reshape(1, S).astype(jnp.float32)
    params = pltpu.CompilerParams(
        dimension_semantics=("parallel",),    # batch blocks shard across TCs
        vmem_limit_bytes=int(vmem_limit),
    )

    if packed:
        w_flat = weight.reshape(F).astype(jnp.float32)
        eye_s = jnp.eye(S, dtype=jnp.float32)
        w_big = jnp.kron(eye_s, w_flat.reshape(F, 1))               # (S*F, S)
        expand = jnp.kron(eye_s, jnp.ones((1, F), jnp.float32))     # (S, S*F)
        pool = jnp.tile(jnp.eye(F, dtype=jnp.float32), (S, 1))      # (S*F, F)
        x2d = x.reshape(B, S * F)       # free: contiguous row-major reshape

        return pl.pallas_call(
            _make_packed_kernel(B, tb),
            out_shape=jax.ShapeDtypeStruct((B, F), out_dtype),
            grid=grid,
            in_specs=[
                pl.BlockSpec((tb, S * F), lambda i: (i, 0)),   # x, lane-dense
                pl.BlockSpec((S * F, S), lambda i: (0, 0)),    # weight (resident)
                pl.BlockSpec((S, S * F), lambda i: (0, 0)),    # expand (resident)
                pl.BlockSpec((S * F, F), lambda i: (0, 0)),    # pool (resident)
                pl.BlockSpec((1, S), lambda i: (0, 0)),        # bias
            ],
            out_specs=pl.BlockSpec((tb, F), lambda i: (i, 0)),
            compiler_params=params,
        )(x2d, w_big, expand, pool, bias_row)

    w_bcast = weight.reshape(1, 1, F).astype(jnp.float32)
    return pl.pallas_call(
        _make_wide_kernel(B, tb),
        out_shape=jax.ShapeDtypeStruct((B, F), out_dtype),
        grid=grid,
        in_specs=[
            pl.BlockSpec((tb, S, F), lambda i: (i, 0, 0)),
            pl.BlockSpec((1, 1, F), lambda i: (0, 0, 0)),
            pl.BlockSpec((1, S), lambda i: (0, 0)),
        ],
        out_specs=pl.BlockSpec((tb, F), lambda i: (i, 0)),
        compiler_params=params,
    )(x, w_bcast, bias_row)


def attention_ref(x, weight, bias):
    """Pure-JAX reference mirroring the PyTorch forward."""
    B, S, F = x.shape
    eij = jnp.dot(x.reshape(-1, F), weight,
                  precision=jax.lax.Precision.HIGHEST).reshape(B, S)
    eij = jnp.tanh(eij + bias)
    a = jnp.exp(eij)
    a = a / jnp.sum(a, axis=1, keepdims=True) + 1e-10
    return jnp.sum(x * a[..., None], axis=1)


if __name__ == "__main__":
    # Small shapes consistent with the module: step_dim=8, feature_dim=32.
    B, S, F = 2, 8, 32

    key = jax.random.PRNGKey(0)
    kx, kw, kx2 = jax.random.split(key, 3)

    x = jax.random.normal(kx, (B, S, F), dtype=jnp.float32)
    bound = math.sqrt(6.0 / (F + 1))        # xavier_uniform-style init
    weight = jax.random.uniform(kw, (F, 1), dtype=jnp.float32,
                                minval=-bound, maxval=bound)
    bias = jnp.zeros((S,), dtype=jnp.float32)

    out = jax.block_until_ready(attention_pool(x, weight, bias))
    ref = attention_ref(x, weight, bias)
    assert out.shape == (B, F)
    assert jnp.allclose(out, ref, atol=1e-5, rtol=1e-5), (out, ref)

    # Multi-block, lane-packed path with a ragged last block (user tile size).
    B2 = 300
    x2 = jax.random.normal(kx2, (B2, S, F), dtype=jnp.float32)
    ref2 = attention_ref(x2, weight, bias)
    out2 = jax.block_until_ready(attention_pool(x2, weight, bias, block_rows=128))
    assert out2.shape == (B2, F)
    assert jnp.allclose(out2, ref2, atol=1e-5, rtol=1e-5)

    # Auto-sized tiles (>= 4 blocks, VMEM-budgeted, ragged last block).
    out3 = jax.block_until_ready(attention_pool(x2, weight, bias))
    assert jnp.allclose(out3, ref2, atol=1e-5, rtol=1e-5)

    # Wide path (F multiple of 128) exercising the (TB, S, F) VPU kernel.
    F3 = 128
    x3 = jax.random.normal(kx, (64, S, F3), dtype=jnp.float32)
    w3 = jax.random.uniform(kw, (F3, 1), dtype=jnp.float32,
                            minval=-0.1, maxval=0.1)
    b3 = 0.1 * jax.random.normal(kw, (S,), dtype=jnp.float32)
    out4 = jax.block_until_ready(attention_pool(x3, w3, b3, block_rows=16))
    ref4 = attention_ref(x3, w3, b3)
    assert jnp.allclose(out4, ref4, atol=1e-5, rtol=1e-5)

    print("KERNEL_OK")
</pallas_src>

<mosaic_0001>
module attributes {stable_mosaic.version = 11 : i64} {
  func.func @kernel(%arg0: i32, %arg1: memref<2x8x32xf32, #tpu.memory_space<vmem>>, %arg2: memref<1x1x32xf32, #tpu.memory_space<vmem>>, %arg3: memref<1x8xf32, #tpu.memory_space<vmem>>, %arg4: memref<2x32xf32, #tpu.memory_space<vmem>>) attributes {dimension_semantics = [#tpu.dimension_semantics<parallel>], iteration_bounds = array<i64: 1>, scalar_prefetch = 0 : i64, scratch_operands = 0 : i64, tpu.core_type = #tpu.core_type<tc>, window_params = [{transform_indices = @transform_0, window_bounds = array<i64: 2, 8, 32>}, {pipeline_mode = #tpu.pipeline_mode<synchronous>, transform_indices = @transform_1, window_bounds = array<i64: 1, 1, 32>}, {pipeline_mode = #tpu.pipeline_mode<synchronous>, transform_indices = @transform_2, window_bounds = array<i64: 1, 8>}, {transform_indices = @transform_3, window_bounds = array<i64: 2, 32>}]} {
    %c0 = arith.constant 0 : index
    %c0_0 = arith.constant 0 : index
    %c0_1 = arith.constant 0 : index
    %0 = vector.load %arg1[%c0, %c0_0, %c0_1] : memref<2x8x32xf32, #tpu.memory_space<vmem>>, vector<2x8x32xf32>
    %c0_2 = arith.constant 0 : index
    %c0_3 = arith.constant 0 : index
    %c0_4 = arith.constant 0 : index
    %1 = vector.load %arg2[%c0_2, %c0_3, %c0_4] : memref<1x1x32xf32, #tpu.memory_space<vmem>>, vector<1x1x32xf32>
    %2 = vector.broadcast %1 : vector<1x1x32xf32> to vector<2x8x32xf32>
    %3 = arith.mulf %0, %2 : vector<2x8x32xf32>
    %cst = arith.constant dense<0.000000e+00> : vector<2x8xf32>
    %4 = vector.multi_reduction <add>, %3, %cst [2] : vector<2x8x32xf32> to vector<2x8xf32>
    %c0_5 = arith.constant 0 : index
    %c0_6 = arith.constant 0 : index
    %5 = vector.load %arg3[%c0_5, %c0_6] : memref<1x8xf32, #tpu.memory_space<vmem>>, vector<1x8xf32>
    %6 = vector.broadcast %5 : vector<1x8xf32> to vector<2x8xf32>
    %7 = arith.addf %4, %6 : vector<2x8xf32>
    %8 = math.tanh %7 : vector<2x8xf32>
    %9 = math.exp %8 : vector<2x8xf32>
    %cst_7 = arith.constant dense<0.000000e+00> : vector<2xf32>
    %10 = vector.multi_reduction <add>, %9, %cst_7 [1] : vector<2x8xf32> to vector<2xf32>
    %11 = vector.shape_cast %10 : vector<2xf32> to vector<2x1xf32>
    %12 = vector.broadcast %11 : vector<2x1xf32> to vector<2x8xf32>
    %13 = arith.divf %9, %12 : vector<2x8xf32>
    %cst_8 = arith.constant 1.000000e-10 : f32
    %14 = vector.broadcast %cst_8 : f32 to vector<2x8xf32>
    %15 = arith.addf %13, %14 : vector<2x8xf32>
    %16 = vector.shape_cast %15 : vector<2x8xf32> to vector<2x8x1xf32>
    %17 = vector.broadcast %16 : vector<2x8x1xf32> to vector<2x8x32xf32>
    %18 = arith.mulf %0, %17 : vector<2x8x32xf32>
    %cst_9 = arith.constant dense<0.000000e+00> : vector<2x32xf32>
    %19 = vector.multi_reduction <add>, %18, %cst_9 [1] : vector<2x8x32xf32> to vector<2x32xf32>
    %c0_10 = arith.constant 0 : index
    %c0_11 = arith.constant 0 : index
    %20 = vector.load %arg4[%c0_10, %c0_11] : memref<2x32xf32, #tpu.memory_space<vmem>>, vector<2x32xf32>
    tpu.vector_store %arg4[%c0_10, %c0_11], %19 {strides = array<i32>} : memref<2x32xf32, #tpu.memory_space<vmem>>, vector<2x32xf32>,
    return
  }
  func.func @transform_0(%arg0: i32) -> (i32, i32, i32) {
    %c0_i32 = arith.constant 0 : i32
    %c0_i32_0 = arith.constant 0 : i32
    %c0_i32_1 = arith.constant 0 : i32
    return %arg0, %c0_i32, %c0_i32_0 : i32, i32, i32
  }
  func.func @transform_1(%arg0: i32) -> (i32, i32, i32) {
    %c0_i32 = arith.constant 0 : i32
    %c0_i32_0 = arith.constant 0 : i32
    %c0_i32_1 = arith.constant 0 : i32
    %c0_i32_2 = arith.constant 0 : i32
    return %c0_i32, %c0_i32_0, %c0_i32_1 : i32, i32, i32
  }
  func.func @transform_2(%arg0: i32) -> (i32, i32) {
    %c0_i32 = arith.constant 0 : i32
    %c0_i32_0 = arith.constant 0 : i32
    %c0_i32_1 = arith.constant 0 : i32
    return %c0_i32, %c0_i32_0 : i32, i32
  }
  func.func @transform_3(%arg0: i32) -> (i32, i32) {
    %c0_i32 = arith.constant 0 : i32
    %c0_i32_0 = arith.constant 0 : i32
    return %arg0, %c0_i32 : i32, i32
  }
}

</mosaic_0001>

<llo_original>
// kernel: tpu_custom_call.1
$region0: #{tpu_custom_call.1}
  #allocation0 [shape = 'u32[]', space=smem, size = 0x4, offset = 0x4, fixed_abs, tag = 'smem constant byte address 0x4 - core index']
  #allocation1 [shape = 'u32[144,128]{1,0:T(1,128)}', space=vmem, size = 0x12000, scoped, tag = 'internal scratch']
  %s0 = inlined_call_operand.hbm [shape: f32[2,8,32], index: 0, kind: input, shape index: {}]
  %s1 = inlined_call_operand.vmem [shape: f32[1,1,32], index: 1, kind: input, shape index: {}]
  %s2 = inlined_call_operand.vmem [shape: f32[1,8], index: 2, kind: input, shape index: {}]
  %s3 = inlined_call_operand.hbm [shape: f32[2,32], index: 3, kind: output, shape index: {}]
  %s4 = sld [smem:[#allocation0]]
  $region26: #{tpu_custom_call.1} parent=0
    _
  %s6 = ssub.s32 1, %s4
  %s7 = scalar_select 0, %s6, %s4
  $region1: #{tpu_custom_call.1} parent=0
    #allocation2 [shape = 'u8[8192]{0}', space=vmem, size = 0x2000, scoped, tag = 'input window, operand 0, single buffered']
    #allocation3 [shape = 's32[1]{0}', space=sflag, size = 0x4, scoped, tag = 'scoped memory for tpu_custom_call.1']
    #allocation4 [shape = 's32[1]{0}', space=sflag, size = 0x4, scoped, tag = 'scoped memory for tpu_custom_call.1']
    #allocation5 [shape = 'u8[1024]{0}', space=vmem, size = 0x400, scoped, tag = 'output window, operand 0, single buffered']
    %8 = vsyncpa [#allocation3], 0
    %9 = vsyncpa [#allocation4], 0
    // Predicated region
    $region2: #{tpu_custom_call.1} parent=1 // pred_check
      _
    $region3: #{tpu_custom_call.1} parent=1 // pred_check_branch
      %11 = sbr.rel (0) target = $region5
    $region4: #{tpu_custom_call.1} parent=1 // pred_region
      %s13 = ssub.s32 256, 256
      %14 = vsyncadd [#allocation3], %s13
      %s15 = sshll.u32 [#allocation2], 4
      %s16 = int_to_ptr.vmem [resolvable:$true] %s15
      %21 = dma.hbm_to_vmem [thread:$0]  %s0, 256, %s16, [#allocation3], 128, 128, 8
    $region5: #{tpu_custom_call.1} parent=1 // pred_fallthru
      _
    // Predicated region
    $region6: #{tpu_custom_call.1} parent=1 // pred_check
      _
    $region7: #{tpu_custom_call.1} parent=1 // pred_check_branch
      %23 = sbr.rel (0) target = $region9
    $region8: #{tpu_custom_call.1} parent=1 // pred_region
      _
    $region9: #{tpu_custom_call.1} parent=1 // pred_fallthru
      _
    // Predicated region
    $region10: #{tpu_custom_call.1} parent=1 // pred_check
      _
    $region11: #{tpu_custom_call.1} parent=1 // pred_check_branch
      %25 = sbr.rel (0) target = $region13
    $region12: #{tpu_custom_call.1} parent=1 // pred_region
      _
    $region13: #{tpu_custom_call.1} parent=1 // pred_fallthru
      _
    // Predicated region
    $region14: #{tpu_custom_call.1} parent=1 // pred_check
      _
    $region15: #{tpu_custom_call.1} parent=1 // pred_check_branch
      %27 = sbr.rel (0) target = $region17
    $region16: #{tpu_custom_call.1} parent=1 // pred_region
      %28 = dma.done [#allocation3], 256
    $region17: #{tpu_custom_call.1} parent=1 // pred_fallthru
      _
    %v29 = vld [vmem:[#allocation2] sm:$0xff]
    %v30 = vld [vmem:[#allocation2 + $0x8] sm:$0xff]
    %v31 = vld [vmem:[%s1] sm:$0x1]
    %v33 = vlaneseq
    %v34 = vshrl.u32 %v33, 7
    %v35 = vsub.s32 0, %v34
    %v36 = vrot.slane %v31, %v35
    %v38 = vmul.f32 %v29, %v36
    %v39 = vmul.f32 %v30, %v36
    %vm40 = vcmask 261120
    %v41 = vsel %vm40, %v38, 0.0
    %42 = vadd.xlane.f32.xlu0 %v41
    %v43 = vpop.xlane.xlu0 %42
    %v44 = vsel %vm40, %v39, 0.0
    %45 = vadd.xlane.f32.xlu0 %v44
    %v46 = vpop.xlane.xlu0 %45
    %v47 = vld [vmem:[%s2] sm:$0x1]
    %v49 = vlaneseq
    %v50 = vshrl.u32 %v49, 7
    %v51 = vsub.s32 0, %v50
    %v52 = vrot.slane %v47, %v51
    %54 = vbcast.lane.b32.xlu0 %v52, 256
    %v55 = vpop.permute.xlu0 %54
    %v57 = vadd.f32 %v43, %v55
    %v58 = vadd.f32 %v46, %v55
    %v59 = vtanh.pop %v57
    %v60 = vtanh.pop %v58
    %v61 = vmul.f32 %v59, 1.442695
    %v62 = vpow.pop %v61
    %v63 = vmul.f32 %v60, 1.442695
    %v64 = vpow.pop %v63
    %67 = vset.pattern.permute.xlu0 0
    %68 = vperm.xlu0 %67, %v62
    %v69 = vpop.permute.xlu0 %68
    %70 = vset.pattern.permute.xlu0 0
    %71 = vperm.xlu0 %70, %v64
    %v72 = vpop.permute.xlu0 %71
    %v73 = vlaneseq
    %v74 = vand.u32 %v73, 127
    %v75 = vlaneseq
    %v76 = vshrl.u32 %v75, 7
    %v77 = vsub.s32 %v74, %v76
    %v78 = vrot.slane %v69, %v77
    %v79 = vlaneseq
    %v80 = vshrl.u32 %v79, 7
    %v81 = vsub.s32 %v74, %v80
    %v82 = vrot.slane %v72, %v81
    %vm83 = vcmask 1041409
    %v84 = vsel %vm83, %v82, %v78
    %vm86 = vcmask 58368
    %v87 = vsel %vm86, %v84, 0.0
    %88 = vadd.xlane.f32.xlu0 %v87
    %v89 = vpop.xlane.xlu0 %88
    %v91 = vlaneseq
    %v92 = vshrl.u32 %v91, 7
    %v93 = vsub.s32 0, %v92
    %v94 = vrot.slane %v89, %v93
    %v95 = vlaneseq
    %v96 = vshrl.u32 %v95, 7
    %v97 = vsub.s32 1, %v96
    %v98 = vrot.slane %v89, %v97
    %v101 = vrcp.pop %v94
    %v102 = vmul.f32 %v62, %v101
    %v103 = vrcp.pop %v98
    %v104 = vmul.f32 %v64, %v103
    %v105 = vadd.f32 %v102, 1e-10
    %v106 = vadd.f32 %v104, 1e-10
    %108 = vset.pattern.permute.xlu0 0
    %109 = vperm.xlu0 %108, %v105
    %v110 = vpop.permute.xlu0 %109
    %113 = vset.pattern.permute.xlu0 0
    %114 = vperm.xlu0 %113, %v106
    %v115 = vpop.permute.xlu0 %114
    %v117 = vmul.f32 %v29, %v110
    %v118 = vmul.f32 %v30, %v115
    %v119 = vsel %vm40, %v117, 0.0
    %v120 = vrot.slane %v119, 4
    %v121 = vadd.f32 %v119, %v120
    %v122 = vrot.slane %v121, 2
    %v123 = vadd.f32 %v121, %v122
    %v124 = vrot.slane %v123, 1
    %v125 = vadd.f32 %v123, %v124
    %v126 = vsel %vm40, %v118, 0.0
    %v127 = vrot.slane %v126, 4
    %v128 = vadd.f32 %v126, %v127
    %v129 = vrot.slane %v128, 2
    %v130 = vadd.f32 %v128, %v129
    %v131 = vrot.slane %v130, 1
    %v132 = vadd.f32 %v130, %v131
    %v135 = vsel %vm83, %v132, %v125
    %vm137 = vcmask 254976
    %138 = vst.msk [vmem:[#allocation5] sm:$0x3] %vm137, %v135
    // Predicated region
    $region18: #{tpu_custom_call.1} parent=1 // pred_check
      _
    $region19: #{tpu_custom_call.1} parent=1 // pred_check_branch
      %140 = sbr.rel (0) target = $region21
    $region20: #{tpu_custom_call.1} parent=1 // pred_region
      %s142 = ssub.s32 32, 32
      %143 = vsyncadd [#allocation4], %s142
      %s145 = sshll.u32 [#allocation5], 4
      %s146 = int_to_ptr.vmem [resolvable:$true] %s145
      %148 = dma.vmem_to_hbm [thread:$0]  %s146, 32, %s3, [#allocation4]
    $region21: #{tpu_custom_call.1} parent=1 // pred_fallthru
      _
    // Predicated region
    $region22: #{tpu_custom_call.1} parent=1 // pred_check
      _
    $region23: #{tpu_custom_call.1} parent=1 // pred_check_branch
      %150 = sbr.rel (0) target = $region25
    $region24: #{tpu_custom_call.1} parent=1 // pred_region
      %151 = dma.done [#allocation4], 32
    $region25: #{tpu_custom_call.1} parent=1 // pred_fallthru
      _
    %152 = vsyncpa [#allocation3], 1
    %153 = vsyncpa [#allocation4], 1

</llo_original>
